<compile_context>
chip_gen: v7x
topology: tpu7x:2x2x1
jax: 0.10.0
libtpu: 0.0.40
codegen_flags: <defaults>
</compile_context>

<pallas_src>
import jax
import jax.numpy as jnp
from jax.experimental import pallas as pl
from jax.experimental.pallas import tpu as pltpu

_LANE = 128
_SUBLANE = 8
_MAX_TILE_ROWS = 512          # ~85% of HBM roofline on v6e for a mem-bound copy
_MAX_TILE_BYTES = 4 << 20     # in+out double-buffered => ~4x block bytes resident;
                              # stays well inside v7x's 64 MiB physical VMEM


# ---------------------------------------------------------------------------
# Optimized forward: the module is a dict-key read, so the fastest correct
# implementation is no kernel at all (zero FLOPs, zero DMA).
# ---------------------------------------------------------------------------
def my_loss_forward(x, y=None):
    """JAX equivalent of MyLoss.forward: return x['loss'] unchanged."""
    return x['loss']


# ---------------------------------------------------------------------------
# Optional kernel-boundary version (only when a custom call must exist).
# ---------------------------------------------------------------------------
def _smem_scalar_kernel(loss_ref, out_ref):
    # One 32-bit word through the scalar path (sld/sst); no VMEM tile at all.
    out_ref[0, 0] = loss_ref[0, 0]


def _copy_kernel(loss_ref, out_ref):
    out_ref[...] = loss_ref[...]


def _pick_row_tile(rows, cols, itemsize):
    """Largest multiple-of-8 divisor of `rows` within the row/byte caps."""
    cap = min(rows, _MAX_TILE_ROWS,
              max(_SUBLANE, _MAX_TILE_BYTES // max(1, cols * itemsize)))
    tr = (cap // _SUBLANE) * _SUBLANE
    while tr >= _SUBLANE:
        if rows % tr == 0:
            return tr
        tr -= _SUBLANE
    return rows


def _scalar_passthrough(loss):
    loss2d = loss.reshape(1, 1)
    out2d = pl.pallas_call(
        _smem_scalar_kernel,
        out_shape=jax.ShapeDtypeStruct((1, 1), loss.dtype),
        in_specs=[pl.BlockSpec(memory_space=pltpu.MemorySpace.SMEM)],
        out_specs=pl.BlockSpec(memory_space=pltpu.MemorySpace.SMEM),
    )(loss2d)
    return out2d.reshape(loss.shape)


def _tensor_passthrough(loss):
    orig_shape = loss.shape
    cols = int(orig_shape[-1])
    rows = int(loss.size) // cols
    x2d = loss.reshape(rows, cols)
    itemsize = jnp.dtype(loss.dtype).itemsize

    if rows % _SUBLANE != 0 or cols % _LANE != 0:
        # Irregular shape: a single full-array block is always legal.
        out2d = pl.pallas_call(
            _copy_kernel,
            out_shape=jax.ShapeDtypeStruct((rows, cols), loss.dtype),
            in_specs=[pl.BlockSpec((rows, cols), lambda: (0, 0))],
            out_specs=pl.BlockSpec((rows, cols), lambda: (0, 0)),
            input_output_aliases={0: 0},
        )(x2d)
        return out2d.reshape(orig_shape)

    tr = _pick_row_tile(rows, cols, itemsize)
    out2d = pl.pallas_call(
        _copy_kernel,
        out_shape=jax.ShapeDtypeStruct((rows, cols), loss.dtype),
        grid=(rows // tr,),
        in_specs=[pl.BlockSpec((tr, cols), lambda i: (i, 0))],
        out_specs=pl.BlockSpec((tr, cols), lambda i: (i, 0)),
        input_output_aliases={0: 0},   # P8: output aliases input, no 2nd HBM buffer
        compiler_params=pltpu.CompilerParams(
            dimension_semantics=("parallel",)),  # v7x: shard copy over both TCs
    )(x2d)
    return out2d.reshape(orig_shape)


def my_loss_forward_pallas(x, y=None):
    """Same semantics as my_loss_forward, routed through a Pallas kernel for
    callers that need an explicit custom-call boundary."""
    loss = jnp.asarray(x['loss'])
    if loss.ndim == 0 or loss.size == 1:
        if jnp.dtype(loss.dtype).itemsize == 4:
            return _scalar_passthrough(loss)
        # TODO(synk): sub-32-bit scalars could be bitcast through SMEM; use the
        # VMEM full-block path as a safe fallback instead.
        return _tensor_passthrough(loss.reshape(1, 1)).reshape(loss.shape)
    return _tensor_passthrough(loss)


if __name__ == "__main__":
    key = jax.random.PRNGKey(0)
    k_loss, k_map, k_logits = jax.random.split(key, 3)

    # --- Scalar loss (the module's typical use) ----------------------------
    loss = jax.random.uniform(k_loss, (), dtype=jnp.float32)
    logits = jax.random.normal(k_logits, (2, 8, 32), dtype=jnp.float32)
    x = {'loss': loss, 'logits': logits}

    # 1) Optimized hot path: zero-cost pass-through (no pallas_call at all).
    out_fast = my_loss_forward(x)
    jax.block_until_ready(out_fast)
    assert out_fast.shape == loss.shape and out_fast.dtype == loss.dtype
    assert bool(jnp.array_equal(out_fast, loss))

    # 2) Kernel-boundary path, scalar case: single SMEM word copy.
    out_scalar = my_loss_forward_pallas(x)
    jax.block_until_ready(out_scalar)
    assert out_scalar.shape == loss.shape and out_scalar.dtype == loss.dtype
    assert bool(jnp.allclose(out_scalar, loss))

    # 3) Kernel-boundary path, tensor-valued loss: lane-dense tiles + aliasing.
    loss_map = jax.random.normal(k_map, (1024, 256), dtype=jnp.float32)
    expected = loss_map + 0.0          # distinct buffer: loss_map is donated below
    out_map = my_loss_forward_pallas({'loss': loss_map})
    jax.block_until_ready(out_map)
    assert out_map.shape == expected.shape and out_map.dtype == expected.dtype
    assert bool(jnp.allclose(out_map, expected))

    print("KERNEL_OK")
</pallas_src>

<mosaic_0001>
module attributes {stable_mosaic.version = 11 : i64} {
  func.func @_smem_scalar_kernel(%arg0: memref<1x1xf32, #tpu.memory_space<smem>>, %arg1: memref<1x1xf32, #tpu.memory_space<smem>>) attributes {dimension_semantics = [], scalar_prefetch = 0 : i64, scratch_operands = 0 : i64, tpu.core_type = #tpu.core_type<tc>} {
    %c0 = arith.constant 0 : index
    %c0_0 = arith.constant 0 : index
    %0 = memref.load %arg0[%c0, %c0_0] : memref<1x1xf32, #tpu.memory_space<smem>>
    %c0_1 = arith.constant 0 : index
    %c0_2 = arith.constant 0 : index
    %1 = memref.load %arg1[%c0_1, %c0_2] : memref<1x1xf32, #tpu.memory_space<smem>>
    memref.store %0, %arg1[%c0_1, %c0_2] : memref<1x1xf32, #tpu.memory_space<smem>>
    return
  }
}

</mosaic_0001>

<llo_original>
// kernel: tpu_custom_call.1
$region0: #{tpu_custom_call.1}
  #allocation0 [shape = 'u32[]', space=smem, size = 0x4, offset = 0x4, fixed_abs, tag = 'smem constant byte address 0x4 - core index']
  #allocation1 [shape = 'u32[144,128]{1,0:T(1,128)}', space=vmem, size = 0x12000, scoped, tag = 'internal scratch']
  #allocation2 [shape = 'f32[1,1]{1,0:T(1,128)S(6)}', space=smem, size = 0x200, scoped, tag = 'scoped memory for tpu_custom_call.1']
  %s0 = inlined_call_operand.<no memory space> [shape: f32[1,1], index: 0, kind: input, shape index: {}]
  %s1 = inlined_call_operand.hbm [shape: f32[1,1], index: 1, kind: output, shape index: {}]
  %s2 = sld [smem:[#allocation0]]
  $region14: #{tpu_custom_call.1} parent=0
    _
  %s4 = ssub.s32 1, %s2
  %s5 = scalar_select 0, %s4, %s2
  %6 = sst [smem:[#allocation2]] %s0
  $region1: #{tpu_custom_call.1} parent=0
    #allocation3 [shape = 'u8[512]{0}', space=smem, size = 0x200, scoped, tag = 'output window, operand 0, single buffered']
    #allocation4 [shape = 's32[1]{0}', space=sflag, size = 0x4, scoped, tag = 'scoped memory for tpu_custom_call.1']
    %7 = vsyncpa [#allocation4], 0
    // Predicated region
    $region2: #{tpu_custom_call.1} parent=1 // pred_check
      _
    $region3: #{tpu_custom_call.1} parent=1 // pred_check_branch
      %9 = sbr.rel (0) target = $region5
    $region4: #{tpu_custom_call.1} parent=1 // pred_region
      _
    $region5: #{tpu_custom_call.1} parent=1 // pred_fallthru
      _
    %s10 = sld [smem:[#allocation2]]
    %s11 = scalar_lea.smem [#allocation3], 0
    %12 = sst [smem:[%s11]] %s10
    // Predicated region
    $region6: #{tpu_custom_call.1} parent=1 // pred_check
      _
    $region7: #{tpu_custom_call.1} parent=1 // pred_check_branch
      %14 = sbr.rel (0) target = $region9
    $region8: #{tpu_custom_call.1} parent=1 // pred_region
      %s16 = ssub.s32 16, 16
      %17 = vsyncadd [#allocation4], %s16
      %20 = dma.smem_to_hbm [#allocation3], 16, %s1, [#allocation4]
    $region9: #{tpu_custom_call.1} parent=1 // pred_fallthru
      _
    // Predicated region
    $region10: #{tpu_custom_call.1} parent=1 // pred_check
      _
    $region11: #{tpu_custom_call.1} parent=1 // pred_check_branch
      %22 = sbr.rel (0) target = $region13
    $region12: #{tpu_custom_call.1} parent=1 // pred_region
      %23 = dma.done [#allocation4], 16
    $region13: #{tpu_custom_call.1} parent=1 // pred_fallthru
      _
    %24 = sfence
    %25 = vsyncpa [#allocation4], 1

</llo_original>
